<compile_context>
chip_gen: v7x
topology: tpu7x:2x2x1
jax: 0.10.0
libtpu: 0.0.40
codegen_flags: <defaults>
</compile_context>

<pallas_src>
import functools

import jax
import jax.numpy as jnp
from jax.experimental import pallas as pl
from jax.experimental.pallas import tpu as pltpu


def _hash_u32(x):
    """murmur3-style finalizer; uint32 in, uint32 out (wraps on overflow)."""
    x = x ^ (x >> 16)
    x = x * jnp.uint32(0x85EBCA6B)
    x = x ^ (x >> 13)
    x = x * jnp.uint32(0xC2B2AE35)
    x = x ^ (x >> 16)
    return x


def _residual_connection_kernel(seed_ref,                                   # scalar-prefetch (SMEM)
                                x_ref, w_ref, b_ref, gamma_ref, beta_ref,   # inputs (VMEM)
                                o_ref,                                      # output (VMEM)
                                *, dropout_p, eps, training, block_rows, dim):
    i = pl.program_id(0)

    x = x_ref[...]                                   # (TR, D), input dtype — feed MXU directly

    # --- sub-layer: Linear(dim, dim) on the MXU, f32 accumulate ---
    h = jnp.dot(x, w_ref[...], preferred_element_type=jnp.float32)
    h = h + b_ref[...].astype(jnp.float32)           # (1, D) broadcast

    # --- dropout (inverted, training mode) via counter-based hash PRNG ---
    if training and dropout_p > 0.0:
        row0 = i * block_rows                        # global row offset of this tile
        rows = jax.lax.broadcasted_iota(jnp.int32, (block_rows, dim), 0) + row0
        cols = jax.lax.broadcasted_iota(jnp.int32, (block_rows, dim), 1)
        idx = (rows * dim + cols).astype(jnp.uint32)  # unique per element, per tile
        seed_u = seed_ref[0].astype(jnp.uint32)
        bits = _hash_u32(idx * jnp.uint32(0x9E3779B1) + seed_u)
        threshold = jnp.uint32(min(int(round(dropout_p * (1 << 32))), (1 << 32) - 1))
        keep = bits >= threshold                      # P(keep) = 1 - p
        h = jnp.where(keep, h * jnp.float32(1.0 / (1.0 - dropout_p)), jnp.float32(0.0))

    # --- residual add (f32) ---
    y = x.astype(jnp.float32) + h

    # --- LayerNorm over last dim, one-pass stats (biased variance, like nn.LayerNorm) ---
    inv_d = jnp.float32(1.0 / dim)
    mean = jnp.sum(y, axis=-1, keepdims=True) * inv_d
    mean_sq = jnp.sum(y * y, axis=-1, keepdims=True) * inv_d
    var = jnp.maximum(mean_sq - mean * mean, jnp.float32(0.0))
    inv_std = jax.lax.rsqrt(var + jnp.float32(eps))
    out = (y - mean) * inv_std * gamma_ref[...].astype(jnp.float32) \
          + beta_ref[...].astype(jnp.float32)

    o_ref[...] = out.astype(o_ref.dtype)


def residual_connection(x, w, b, gamma, beta, *, seed=0, dropout_p=0.2,
                        eps=1e-5, training=True, block_rows=256):
    """x: (B, S, D) or (R, D). Returns same shape. Applies LN(x + dropout(x @ W + b))."""
    orig_shape = x.shape
    D = orig_shape[-1]
    x2 = x.reshape(-1, D)
    R = x2.shape[0]

    # Row tile: multiple of 8 sublanes, capped at block_rows; pad rows so TR divides R_pad.
    TR = min(block_rows, ((R + 7) // 8) * 8)
    TR = max(8, ((TR + 7) // 8) * 8)
    R_pad = ((R + TR - 1) // TR) * TR
    if R_pad != R:
        x2 = jnp.pad(x2, ((0, R_pad - R), (0, 0)))

    b2 = b.reshape(1, D)
    g2 = gamma.reshape(1, D)
    be2 = beta.reshape(1, D)
    seed_arr = jnp.asarray([seed], dtype=jnp.int32)

    kernel = functools.partial(_residual_connection_kernel,
                               dropout_p=dropout_p, eps=eps, training=training,
                               block_rows=TR, dim=D)

    itemsize = jnp.dtype(x.dtype).itemsize
    cost = pl.CostEstimate(
        flops=2 * R_pad * D * D + 10 * R_pad * D,
        transcendentals=R_pad,
        bytes_accessed=(2 * R_pad * D + D * D + 3 * D) * itemsize,
    )

    out = pl.pallas_call(
        kernel,
        out_shape=jax.ShapeDtypeStruct((R_pad, D), x.dtype),
        grid_spec=pltpu.PrefetchScalarGridSpec(
            num_scalar_prefetch=1,
            grid=(R_pad // TR,),
            in_specs=[
                pl.BlockSpec((TR, D), lambda i, seed: (i, 0)),   # x (row-tiled)
                pl.BlockSpec((D, D), lambda i, seed: (0, 0)),    # W (VMEM-resident)
                pl.BlockSpec((1, D), lambda i, seed: (0, 0)),    # b
                pl.BlockSpec((1, D), lambda i, seed: (0, 0)),    # gamma
                pl.BlockSpec((1, D), lambda i, seed: (0, 0)),    # beta
            ],
            out_specs=pl.BlockSpec((TR, D), lambda i, seed: (i, 0)),
        ),
        compiler_params=pltpu.CompilerParams(
            dimension_semantics=("parallel",)),
        cost_estimate=cost,
    )(seed_arr, x2, w, b2, g2, be2)

    return out[:R].reshape(orig_shape)


if __name__ == "__main__":
    key = jax.random.PRNGKey(0)
    k_x, k_w, k_b = jax.random.split(key, 3)

    B, S, D = 2, 8, 32   # batch, seq, hidden (LayerNorm dimension)

    x = jax.random.normal(k_x, (B, S, D), dtype=jnp.float32)

    # Sub-layer (Linear) params — deterministic synthetic init.
    w = jax.random.normal(k_w, (D, D), dtype=jnp.float32) * (1.0 / jnp.sqrt(D))
    b = jax.random.normal(k_b, (D,), dtype=jnp.float32) * 0.01

    # nn.LayerNorm default init: weight=1, bias=0.
    gamma = jnp.ones((D,), dtype=jnp.float32)
    beta = jnp.zeros((D,), dtype=jnp.float32)

    # Training mode (dropout active).
    out = residual_connection(x, w, b, gamma, beta, seed=0,
                              dropout_p=0.2, training=True)
    out = jax.block_until_ready(out)
    assert out.shape == (B, S, D)
    assert bool(jnp.all(jnp.isfinite(out)))

    # Sanity check with dropout disabled against a pure-JAX reference.
    out_eval = jax.block_until_ready(
        residual_connection(x, w, b, gamma, beta, training=False))
    y_ref = x + (x.reshape(-1, D) @ w + b).reshape(B, S, D)
    mean = jnp.mean(y_ref, axis=-1, keepdims=True)
    var = jnp.mean(jnp.square(y_ref - mean), axis=-1, keepdims=True)
    ref = (y_ref - mean) / jnp.sqrt(var + 1e-5) * gamma + beta
    assert bool(jnp.allclose(out_eval, ref, atol=1e-4, rtol=1e-4))

    print("KERNEL_OK")
</pallas_src>

<mosaic_0001>
module attributes {stable_mosaic.version = 11 : i64} {
  func.func @_residual_connection_kernel(%arg0: i32, %arg1: memref<1xi32, #tpu.memory_space<smem>>, %arg2: memref<16x32xf32, #tpu.memory_space<vmem>>, %arg3: memref<32x32xf32, #tpu.memory_space<vmem>>, %arg4: memref<1x32xf32, #tpu.memory_space<vmem>>, %arg5: memref<1x32xf32, #tpu.memory_space<vmem>>, %arg6: memref<1x32xf32, #tpu.memory_space<vmem>>, %arg7: memref<16x32xf32, #tpu.memory_space<vmem>>) attributes {dimension_semantics = [#tpu.dimension_semantics<parallel>], iteration_bounds = array<i64: 1>, scalar_prefetch = 1 : i64, scratch_operands = 0 : i64, tpu.core_type = #tpu.core_type<tc>, window_params = [{transform_indices = @transform_0, window_bounds = array<i64: 16, 32>}, {pipeline_mode = #tpu.pipeline_mode<synchronous>, transform_indices = @transform_1, window_bounds = array<i64: 32, 32>}, {pipeline_mode = #tpu.pipeline_mode<synchronous>, transform_indices = @transform_2, window_bounds = array<i64: 1, 32>}, {pipeline_mode = #tpu.pipeline_mode<synchronous>, transform_indices = @transform_3, window_bounds = array<i64: 1, 32>}, {pipeline_mode = #tpu.pipeline_mode<synchronous>, transform_indices = @transform_4, window_bounds = array<i64: 1, 32>}, {transform_indices = @transform_5, window_bounds = array<i64: 16, 32>}]} {
    %c0 = arith.constant 0 : index
    %c0_0 = arith.constant 0 : index
    %0 = vector.load %arg2[%c0, %c0_0] : memref<16x32xf32, #tpu.memory_space<vmem>>, vector<16x32xf32>
    %c0_1 = arith.constant 0 : index
    %c0_2 = arith.constant 0 : index
    %1 = vector.load %arg3[%c0_1, %c0_2] : memref<32x32xf32, #tpu.memory_space<vmem>>, vector<32x32xf32>
    %cst = arith.constant dense<0.000000e+00> : vector<16x32xf32>
    %2 = tpu.matmul %0, %1, %cst {dimension_numbers = #tpu.dot_dimension_numbers<[1], [0], [0], [1], [0, 0, 1, 1], [], []>} : vector<16x32xf32>, vector<32x32xf32>, vector<16x32xf32> -> vector<16x32xf32>
    %c0_3 = arith.constant 0 : index
    %c0_4 = arith.constant 0 : index
    %3 = vector.load %arg4[%c0_3, %c0_4] : memref<1x32xf32, #tpu.memory_space<vmem>>, vector<1x32xf32>
    %4 = vector.broadcast %3 : vector<1x32xf32> to vector<16x32xf32>
    %5 = arith.addf %2, %4 : vector<16x32xf32>
    %c16_i32 = arith.constant 16 : i32
    %6 = arith.muli %arg0, %c16_i32 : i32
    %7 = tpu.iota {dimensions = array<i32: 0>} : vector<16x32xi32>
    %8 = vector.broadcast %6 : i32 to vector<16x32xi32>
    %9 = arith.addi %7, %8 : vector<16x32xi32>
    %10 = tpu.iota {dimensions = array<i32: 1>} : vector<16x32xi32>
    %c32_i32 = arith.constant 32 : i32
    %11 = vector.broadcast %c32_i32 : i32 to vector<16x32xi32>
    %12 = arith.muli %9, %11 : vector<16x32xi32>
    %13 = arith.addi %12, %10 : vector<16x32xi32>
    %c0_5 = arith.constant 0 : index
    %14 = memref.load %arg1[%c0_5] : memref<1xi32, #tpu.memory_space<smem>>
    %c-1640531535_i32 = arith.constant -1640531535 : i32
    %15 = vector.broadcast %c-1640531535_i32 : i32 to vector<16x32xi32>
    %16 = arith.muli %13, %15 : vector<16x32xi32>
    %17 = vector.broadcast %14 : i32 to vector<16x32xi32>
    %18 = arith.addi %16, %17 : vector<16x32xi32>
    %c16_i32_6 = arith.constant 16 : i32
    %19 = vector.broadcast %c16_i32_6 : i32 to vector<16x32xi32>
    %20 = arith.shrui %18, %19 : vector<16x32xi32>
    %21 = arith.xori %18, %20 : vector<16x32xi32>
    %c-2048144789_i32 = arith.constant -2048144789 : i32
    %22 = vector.broadcast %c-2048144789_i32 : i32 to vector<16x32xi32>
    %23 = arith.muli %21, %22 : vector<16x32xi32>
    %c13_i32 = arith.constant 13 : i32
    %24 = vector.broadcast %c13_i32 : i32 to vector<16x32xi32>
    %25 = arith.shrui %23, %24 : vector<16x32xi32>
    %26 = arith.xori %23, %25 : vector<16x32xi32>
    %c-1028477387_i32 = arith.constant -1028477387 : i32
    %27 = vector.broadcast %c-1028477387_i32 : i32 to vector<16x32xi32>
    %28 = arith.muli %26, %27 : vector<16x32xi32>
    %c16_i32_7 = arith.constant 16 : i32
    %29 = vector.broadcast %c16_i32_7 : i32 to vector<16x32xi32>
    %30 = arith.shrui %28, %29 : vector<16x32xi32>
    %31 = arith.xori %28, %30 : vector<16x32xi32>
    %c858993459_i32 = arith.constant 858993459 : i32
    %32 = vector.broadcast %c858993459_i32 : i32 to vector<16x32xi32>
    %33 = arith.cmpi uge, %31, %32 : vector<16x32xi32>
    %cst_8 = arith.constant 1.250000e+00 : f32
    %34 = vector.broadcast %cst_8 : f32 to vector<16x32xf32>
    %35 = arith.mulf %5, %34 : vector<16x32xf32>
    %cst_9 = arith.constant 0.000000e+00 : f32
    %36 = vector.broadcast %cst_9 : f32 to vector<16x32xf32>
    %37 = arith.select %33, %35, %36 : vector<16x32xi1>, vector<16x32xf32>
    %38 = arith.addf %0, %37 : vector<16x32xf32>
    %cst_10 = arith.constant dense<0.000000e+00> : vector<16xf32>
    %39 = vector.multi_reduction <add>, %38, %cst_10 [1] : vector<16x32xf32> to vector<16xf32>
    %40 = vector.shape_cast %39 : vector<16xf32> to vector<16x1xf32>
    %cst_11 = arith.constant 3.125000e-02 : f32
    %41 = vector.broadcast %cst_11 : f32 to vector<16x1xf32>
    %42 = arith.mulf %40, %41 : vector<16x1xf32>
    %43 = arith.mulf %38, %38 : vector<16x32xf32>
    %cst_12 = arith.constant dense<0.000000e+00> : vector<16xf32>
    %44 = vector.multi_reduction <add>, %43, %cst_12 [1] : vector<16x32xf32> to vector<16xf32>
    %45 = vector.shape_cast %44 : vector<16xf32> to vector<16x1xf32>
    %cst_13 = arith.constant 3.125000e-02 : f32
    %46 = vector.broadcast %cst_13 : f32 to vector<16x1xf32>
    %47 = arith.mulf %45, %46 : vector<16x1xf32>
    %48 = arith.mulf %42, %42 : vector<16x1xf32>
    %49 = arith.subf %47, %48 : vector<16x1xf32>
    %cst_14 = arith.constant 0.000000e+00 : f32
    %50 = vector.broadcast %cst_14 : f32 to vector<16x1xf32>
    %51 = arith.maximumf %49, %50 : vector<16x1xf32>
    %cst_15 = arith.constant 9.99999974E-6 : f32
    %52 = vector.broadcast %cst_15 : f32 to vector<16x1xf32>
    %53 = arith.addf %51, %52 : vector<16x1xf32>
    %54 = math.rsqrt %53 : vector<16x1xf32>
    %55 = vector.broadcast %42 : vector<16x1xf32> to vector<16x32xf32>
    %56 = arith.subf %38, %55 : vector<16x32xf32>
    %57 = vector.broadcast %54 : vector<16x1xf32> to vector<16x32xf32>
    %58 = arith.mulf %56, %57 : vector<16x32xf32>
    %c0_16 = arith.constant 0 : index
    %c0_17 = arith.constant 0 : index
    %59 = vector.load %arg5[%c0_16, %c0_17] : memref<1x32xf32, #tpu.memory_space<vmem>>, vector<1x32xf32>
    %60 = vector.broadcast %59 : vector<1x32xf32> to vector<16x32xf32>
    %61 = arith.mulf %58, %60 : vector<16x32xf32>
    %c0_18 = arith.constant 0 : index
    %c0_19 = arith.constant 0 : index
    %62 = vector.load %arg6[%c0_18, %c0_19] : memref<1x32xf32, #tpu.memory_space<vmem>>, vector<1x32xf32>
    %63 = vector.broadcast %62 : vector<1x32xf32> to vector<16x32xf32>
    %64 = arith.addf %61, %63 : vector<16x32xf32>
    %c0_20 = arith.constant 0 : index
    %c0_21 = arith.constant 0 : index
    %65 = vector.load %arg7[%c0_20, %c0_21] : memref<16x32xf32, #tpu.memory_space<vmem>>, vector<16x32xf32>
    tpu.vector_store %arg7[%c0_20, %c0_21], %64 {strides = array<i32>} : memref<16x32xf32, #tpu.memory_space<vmem>>, vector<16x32xf32>,
    return
  }
  func.func @transform_0(%arg0: i32, %arg1: memref<1xi32, #tpu.memory_space<smem>>) -> (i32, i32) {
    %c0_i32 = arith.constant 0 : i32
    %c0_i32_0 = arith.constant 0 : i32
    return %arg0, %c0_i32 : i32, i32
  }
  func.func @transform_1(%arg0: i32, %arg1: memref<1xi32, #tpu.memory_space<smem>>) -> (i32, i32) {
    %c0_i32 = arith.constant 0 : i32
    %c0_i32_0 = arith.constant 0 : i32
    %c0_i32_1 = arith.constant 0 : i32
    return %c0_i32, %c0_i32_0 : i32, i32
  }
  func.func @transform_2(%arg0: i32, %arg1: memref<1xi32, #tpu.memory_space<smem>>) -> (i32, i32) {
    %c0_i32 = arith.constant 0 : i32
    %c0_i32_0 = arith.constant 0 : i32
    %c0_i32_1 = arith.constant 0 : i32
    return %c0_i32, %c0_i32_0 : i32, i32
  }
  func.func @transform_3(%arg0: i32, %arg1: memref<1xi32, #tpu.memory_space<smem>>) -> (i32, i32) {
    %c0_i32 = arith.constant 0 : i32
    %c0_i32_0 = arith.constant 0 : i32
    %c0_i32_1 = arith.constant 0 : i32
    return %c0_i32, %c0_i32_0 : i32, i32
  }
  func.func @transform_4(%arg0: i32, %arg1: memref<1xi32, #tpu.memory_space<smem>>) -> (i32, i32) {
    %c0_i32 = arith.constant 0 : i32
    %c0_i32_0 = arith.constant 0 : i32
    %c0_i32_1 = arith.constant 0 : i32
    return %c0_i32, %c0_i32_0 : i32, i32
  }
  func.func @transform_5(%arg0: i32, %arg1: memref<1xi32, #tpu.memory_space<smem>>) -> (i32, i32) {
    %c0_i32 = arith.constant 0 : i32
    %c0_i32_0 = arith.constant 0 : i32
    return %arg0, %c0_i32 : i32, i32
  }
}

</mosaic_0001>

<llo_original>
// kernel: tpu_custom_call.1
$region0: #{tpu_custom_call.1}
  #allocation0 [shape = 'u32[]', space=smem, size = 0x4, offset = 0x4, fixed_abs, tag = 'smem constant byte address 0x4 - core index']
  #allocation1 [shape = 'u32[144,128]{1,0:T(1,128)}', space=vmem, size = 0x12000, scoped, tag = 'internal scratch']
  #allocation2 [shape = 's32[1]{0}', space=sflag, size = 0x4, scoped, tag = 'scoped memory for tpu_custom_call.1']
  #allocation3 [shape = 's32[1]{0:T(128)S(6)}', space=smem, size = 0x200, scoped, tag = 'prefetched SMEM operand 0']
  %s0 = inlined_call_operand.<no memory space> [shape: s32[1], index: 0, kind: input, shape index: {}]
  %s1 = inlined_call_operand.hbm [shape: f32[16,32], index: 1, kind: input, shape index: {}]
  %s2 = inlined_call_operand.hbm [shape: f32[32,32], index: 2, kind: input, shape index: {}]
  %s3 = inlined_call_operand.vmem [shape: f32[1,32], index: 3, kind: input, shape index: {}]
  %s4 = inlined_call_operand.vmem [shape: f32[1,32], index: 4, kind: input, shape index: {}]
  %s5 = inlined_call_operand.vmem [shape: f32[1,32], index: 5, kind: input, shape index: {}]
  %s6 = inlined_call_operand.hbm [shape: f32[16,32], index: 6, kind: output, shape index: {}]
  %s7 = sld [smem:[#allocation0]]
  $region38: #{tpu_custom_call.1} parent=0
    _
  %s9 = ssub.s32 1, %s7
  %s10 = scalar_select 0, %s9, %s7
  %11 = sst [smem:[#allocation3]] %s0
  $region1: #{tpu_custom_call.1} parent=0
    #allocation4 [shape = 'u8[8192]{0}', space=vmem, size = 0x2000, scoped, tag = 'input window, operand 1, single buffered']
    #allocation5 [shape = 's32[1]{0}', space=sflag, size = 0x4, scoped, tag = 'scoped memory for tpu_custom_call.1']
    #allocation6 [shape = 's32[1]{0}', space=sflag, size = 0x4, scoped, tag = 'scoped memory for tpu_custom_call.1']
    #allocation7 [shape = 'u8[16384]{0}', space=vmem, size = 0x4000, scoped, tag = 'input window, operand 2, single buffered']
    #allocation8 [shape = 's32[1]{0}', space=sflag, size = 0x4, scoped, tag = 'scoped memory for tpu_custom_call.1']
    #allocation9 [shape = 'u8[8192]{0}', space=vmem, size = 0x2000, scoped, tag = 'output window, operand 0, single buffered']
    %12 = vsyncpa [#allocation5], 0
    %13 = vsyncpa [#allocation8], 0
    %14 = vsyncpa [#allocation6], 0
    // Predicated region
    $region2: #{tpu_custom_call.1} parent=1 // pred_check
      _
    $region3: #{tpu_custom_call.1} parent=1 // pred_check_branch
      %16 = sbr.rel (0) target = $region5
    $region4: #{tpu_custom_call.1} parent=1 // pred_region
      %s18 = ssub.s32 256, 256
      %19 = vsyncadd [#allocation5], %s18
      %s20 = sshll.u32 [#allocation4], 4
      %s21 = int_to_ptr.vmem [resolvable:$true] %s20
      %26 = dma.hbm_to_vmem [thread:$0]  %s1, 256, %s21, [#allocation5], 128, 128, 8
    $region5: #{tpu_custom_call.1} parent=1 // pred_fallthru
      _
    // Predicated region
    $region6: #{tpu_custom_call.1} parent=1 // pred_check
      _
    $region7: #{tpu_custom_call.1} parent=1 // pred_check_branch
      %28 = sbr.rel (0) target = $region9
    $region8: #{tpu_custom_call.1} parent=1 // pred_region
      %s30 = ssub.s32 512, 512
      %31 = vsyncadd [#allocation8], %s30
      %s32 = sshll.u32 [#allocation7], 4
      %s33 = int_to_ptr.vmem [resolvable:$true] %s32
      %38 = dma.hbm_to_vmem [thread:$0]  %s2, 512, %s33, [#allocation8], 128, 128, 8
    $region9: #{tpu_custom_call.1} parent=1 // pred_fallthru
      _
    // Predicated region
    $region10: #{tpu_custom_call.1} parent=1 // pred_check
      _
    $region11: #{tpu_custom_call.1} parent=1 // pred_check_branch
      %40 = sbr.rel (0) target = $region13
    $region12: #{tpu_custom_call.1} parent=1 // pred_region
      _
    $region13: #{tpu_custom_call.1} parent=1 // pred_fallthru
      _
    // Predicated region
    $region14: #{tpu_custom_call.1} parent=1 // pred_check
      _
    $region15: #{tpu_custom_call.1} parent=1 // pred_check_branch
      %42 = sbr.rel (0) target = $region17
    $region16: #{tpu_custom_call.1} parent=1 // pred_region
      _
    $region17: #{tpu_custom_call.1} parent=1 // pred_fallthru
      _
    // Predicated region
    $region18: #{tpu_custom_call.1} parent=1 // pred_check
      _
    $region19: #{tpu_custom_call.1} parent=1 // pred_check_branch
      %44 = sbr.rel (0) target = $region21
    $region20: #{tpu_custom_call.1} parent=1 // pred_region
      _
    $region21: #{tpu_custom_call.1} parent=1 // pred_fallthru
      _
    // Predicated region
    $region22: #{tpu_custom_call.1} parent=1 // pred_check
      _
    $region23: #{tpu_custom_call.1} parent=1 // pred_check_branch
      %46 = sbr.rel (0) target = $region25
    $region24: #{tpu_custom_call.1} parent=1 // pred_region
      %47 = dma.done [#allocation5], 256
    $region25: #{tpu_custom_call.1} parent=1 // pred_fallthru
      _
    // Predicated region
    $region26: #{tpu_custom_call.1} parent=1 // pred_check
      _
    $region27: #{tpu_custom_call.1} parent=1 // pred_check_branch
      %49 = sbr.rel (0) target = $region29
    $region28: #{tpu_custom_call.1} parent=1 // pred_region
      %50 = dma.done [#allocation8], 512
    $region29: #{tpu_custom_call.1} parent=1 // pred_fallthru
      _
    %v51 = vld [vmem:[#allocation4] sm:$0xff]
    %v52 = vld [vmem:[#allocation4 + $0x8] sm:$0xff]
    %v53 = vld [vmem:[#allocation7] sm:$0xff]
    %v54 = vld [vmem:[#allocation7 + $0x8] sm:$0xff]
    %v55 = vld [vmem:[#allocation7 + $0x10] sm:$0xff]
    %v56 = vld [vmem:[#allocation7 + $0x18] sm:$0xff]
    %v57 = vld [vmem:[%s3] sm:$0x1]
    %v59 = vlaneseq
    %v60 = vshrl.u32 %v59, 7
    %v61 = vsub.s32 0, %v60
    %v62 = vrot.slane %v57, %v61
    %vm64 = vcmask 261120
    %v66 = vsel %vm64, %v51, 0
    %v69 = vsel %vm64, %v52, 0
    %71 = vmatprep.subr.mxu0 0.0
    %72 = vmatpush1.msra.mxu0 %v53
    %73 = vmatprep.subr.mxu0 0.0
    %74 = vmatpush1.msra.mxu0 %v54
    %75 = vmatprep.subr.mxu0 0.0
    %76 = vmatpush1.msra.mxu0 %v55
    %77 = vmatprep.subr.mxu0 0.0
    %78 = vmatpush1.msra.mxu0 %v56
    %79 = vmatprep.subr.mxu0 0.0
    %80 = vmatpush1.msra.mxu0 0.0
    %81 = vmatprep.subr.mxu0 0.0
    %82 = vmatpush1.msra.mxu0 0.0
    %83 = vmatprep.subr.mxu0 0.0
    %84 = vmatpush1.msra.mxu0 0.0
    %85 = vmatprep.subr.mxu0 0.0
    %86 = vmatpush1.msra.mxu0 0.0
    %87 = vmatprep.subr.mxu0 0.0
    %88 = vmatpush1.msra.mxu0 0.0
    %89 = vmatprep.subr.mxu0 0.0
    %90 = vmatpush1.msra.mxu0 0.0
    %91 = vmatprep.subr.mxu0 0.0
    %92 = vmatpush1.msra.mxu0 0.0
    %93 = vmatprep.subr.mxu0 0.0
    %94 = vmatpush1.msra.mxu0 0.0
    %95 = vmatprep.subr.mxu0 0.0
    %96 = vmatpush1.msra.mxu0 0.0
    %97 = vmatprep.subr.mxu0 0.0
    %98 = vmatpush1.msra.mxu0 0.0
    %99 = vmatprep.subr.mxu0 0.0
    %100 = vmatpush1.msra.mxu0 0.0
    %101 = vmatprep.subr.mxu0 0.0
    %102 = vmatpush1.msra.mxu0 0.0
    %103 = vmatprep.subr.mxu0 0.0
    %104 = vmatpush1.msra.mxu0 0.0
    %105 = vmatprep.subr.mxu0 0.0
    %106 = vmatpush1.msra.mxu0 0.0
    %107 = vmatprep.subr.mxu0 0.0
    %108 = vmatpush1.msra.mxu0 0.0
    %109 = vmatprep.subr.mxu0 0.0
    %110 = vmatpush1.msra.mxu0 0.0
    %111 = vmatprep.subr.mxu0 0.0
    %112 = vmatpush1.msra.mxu0 0.0
    %113 = vmatprep.subr.mxu0 0.0
    %114 = vmatpush1.msra.mxu0 0.0
    %115 = vmatprep.subr.mxu0 0.0
    %116 = vmatpush1.msra.mxu0 0.0
    %117 = vmatprep.subr.mxu0 0.0
    %118 = vmatpush1.msra.mxu0 0.0
    %119 = vmatprep.subr.mxu0 0.0
    %120 = vmatpush1.msra.mxu0 0.0
    %121 = vmatprep.subr.mxu0 0.0
    %122 = vmatpush1.msra.mxu0 0.0
    %123 = vmatprep.subr.mxu0 0.0
    %124 = vmatpush1.msra.mxu0 0.0
    %125 = vmatprep.subr.mxu0 0.0
    %126 = vmatpush1.msra.mxu0 0.0
    %127 = vmatprep.subr.mxu0 0.0
    %128 = vmatpush1.msra.mxu0 0.0
    %129 = vmatprep.subr.mxu0 0.0
    %130 = vmatpush1.msra.mxu0 0.0
    %131 = vmatprep.subr.mxu0 0.0
    %132 = vmatpush1.msra.mxu0 0.0
    %133 = vmatprep.subr.mxu0 0.0
    %134 = vmatpush1.msra.mxu0 0.0
    %135 = vmatprep.mubr.f32.mxu0 0.0
    %136 = vmatmul.mubr.f32.gmra.mrb[0].mxu0 %v66
    %v137 = vpop.f32.mrb[0].mxu0
    %v138 = vadd.f32 %v62, %v137
    %v139 = vpop.f32.mrb[0].mxu0
    %140 = vmatprep.mubr.f32.mxu0 0.0
    %141 = vmatmul.mubr.f32.gmra.mrb[0].mxu0 %v69
    %v142 = vpop.f32.mrb[0].mxu0
    %v143 = vadd.f32 %v62, %v142
    %v144 = vpop.f32.mrb[0].mxu0
    %145 = vdwg.mxu0
    %s146 = smul.u32 0, 16
    %v147 = vlaneseq
    %v148 = vshrl.u32 %v147, 7
    %v149 = vadd.s32 %v148, 8
    %v150 = vstv %s146
    %v151 = vadd.s32 %v148, %v150
    %v152 = vadd.s32 %v149, %v150
    %v153 = vlaneseq
    %v154 = vand.u32 %v153, 127
    %v155 = vmul.u32 %v151, 32
    %v156 = vmul.u32 %v152, 32
    %v157 = vadd.s32 %v155, %v154
    %v158 = vadd.s32 %v156, %v154
    %s159 = sld [smem:[#allocation3]]
    %v160 = vmul.u32 %v157, 2654435761
    %v161 = vmul.u32 %v158, 2654435761
    %v162 = vstv %s159
    %v163 = vadd.s32 %v160, %v162
    %v164 = vadd.s32 %v161, %v162
    %v165 = vshrl.u32 %v163, 16
    %v166 = vshrl.u32 %v164, 16
    %v167 = vxor.u32 %v163, %v165
    %v168 = vxor.u32 %v164, %v166
    %v169 = vmul.u32 %v167, 2246822507
    %v170 = vmul.u32 %v168, 2246822507
    %v171 = vshrl.u32 %v169, 13
    %v172 = vshrl.u32 %v170, 13
    %v173 = vxor.u32 %v169, %v171
    %v174 = vxor.u32 %v170, %v172
    %v175 = vmul.u32 %v173, 3266489909
    %v176 = vmul.u32 %v174, 3266489909
    %v177 = vshrl.u32 %v175, 16
    %v178 = vshrl.u32 %v176, 16
    %v179 = vxor.u32 %v175, %v177
    %v180 = vxor.u32 %v176, %v178
    %vm181 = vcmp.ge.u32.totalorder %v179, 858993459
    %vm182 = vcmp.ge.u32.totalorder %v180, 858993459
    %v183 = vmul.f32 %v138, 1.25
    %v184 = vmul.f32 %v143, 1.25
    %v185 = vsel %vm181, %v183, 0.0
    %v186 = vsel %vm182, %v184, 0.0
    %v187 = vadd.f32 %v51, %v185
    %v188 = vadd.f32 %v52, %v186
    %v189 = vsel %vm64, %v187, 0.0
    %190 = vadd.xlane.f32.xlu0 %v189
    %v191 = vpop.xlane.xlu0 %190
    %v192 = vsel %vm64, %v188, 0.0
    %193 = vadd.xlane.f32.xlu0 %v192
    %v194 = vpop.xlane.xlu0 %193
    %v195 = vmul.f32 %v191, 0.03125
    %v196 = vmul.f32 %v194, 0.03125
    %v197 = vmul.f32 %v187, %v187
    %v198 = vmul.f32 %v188, %v188
    %v199 = vsel %vm64, %v197, 0.0
    %200 = vadd.xlane.f32.xlu0 %v199
    %v201 = vpop.xlane.xlu0 %200
    %v202 = vsel %vm64, %v198, 0.0
    %203 = vadd.xlane.f32.xlu0 %v202
    %v204 = vpop.xlane.xlu0 %203
    %v205 = vmul.f32 %v201, 0.03125
    %v206 = vmul.f32 %v204, 0.03125
    %v207 = vmul.f32 %v195, %v195
    %v208 = vmul.f32 %v196, %v196
    %v209 = vsub.f32 %v205, %v207
    %v210 = vsub.f32 %v206, %v208
    %v211 = vmax.f32 %v209, 0.0
    %v212 = vmax.f32 %v210, 0.0
    %v213 = vadd.f32 %v211, 1e-05
    %v214 = vadd.f32 %v212, 1e-05
    %v215 = vrsqrt.pop %v213
    %v216 = vrsqrt.pop %v214
    %v217 = vsub.f32 %v187, %v195
    %v218 = vsub.f32 %v188, %v196
    %v219 = vmul.f32 %v217, %v215
    %v220 = vmul.f32 %v218, %v216
    %v221 = vld [vmem:[%s4] sm:$0x1]
    %v223 = vlaneseq
    %v224 = vshrl.u32 %v223, 7
    %v225 = vsub.s32 0, %v224
    %v226 = vrot.slane %v221, %v225
    %v228 = vmul.f32 %v219, %v226
    %v229 = vmul.f32 %v220, %v226
    %v230 = vld [vmem:[%s5] sm:$0x1]
    %v232 = vlaneseq
    %v233 = vshrl.u32 %v232, 7
    %v234 = vsub.s32 0, %v233
    %v235 = vrot.slane %v230, %v234
    %v237 = vadd.f32 %v228, %v235
    %v238 = vadd.f32 %v229, %v235
    %239 = vst.msk [vmem:[#allocation9] sm:$0xff] %vm64, %v237
    %240 = vst.msk [vmem:[#allocation9 + $0x8] sm:$0xff] %vm64, %v238
    // Predicated region
    $region30: #{tpu_custom_call.1} parent=1 // pred_check
      _
    $region31: #{tpu_custom_call.1} parent=1 // pred_check_branch
      %242 = sbr.rel (0) target = $region33
    $region32: #{tpu_custom_call.1} parent=1 // pred_region
      %s244 = ssub.s32 256, 256
      %245 = vsyncadd [#allocation6], %s244
      %s246 = sshll.u32 [#allocation9], 4
      %s247 = int_to_ptr.vmem [resolvable:$true] %s246
      %252 = dma.vmem_to_hbm [thread:$0]  %s247, 256, %s6, [#allocation6], 128, 128, 8
    $region33: #{tpu_custom_call.1} parent=1 // pred_fallthru
      _
    // Predicated region
    $region34: #{tpu_custom_call.1} parent=1 // pred_check
      _
    $region35: #{tpu_custom_call.1} parent=1 // pred_check_branch
      %254 = sbr.rel (0) target = $region37
    $region36: #{tpu_custom_call.1} parent=1 // pred_region
      %255 = dma.done [#allocation6], 256
    $region37: #{tpu_custom_call.1} parent=1 // pred_fallthru
      _
    %256 = vsyncpa [#allocation5], 1
    %257 = vsyncpa [#allocation8], 1
    %258 = vsyncpa [#allocation6], 1

</llo_original>
